<compile_context>
chip_gen: v7x
topology: tpu7x:2x2x1
jax: 0.10.0
libtpu: 0.0.40
codegen_flags: <defaults>
</compile_context>

<pallas_src>
import numpy as np
import jax
import jax.numpy as jnp
from jax.experimental import pallas as pl
from jax.experimental.pallas import tpu as pltpu


# --------------------- parameter construction (plain numpy/JAX glue) -----------

def _make_HiPPO(N):
    P = np.sqrt(1.0 + 2.0 * np.arange(N))
    A = P[:, None] * P[None, :]
    A = np.tril(A) - np.diag(np.arange(N))
    return -A


def _make_NPLR_HiPPO(N):
    hippo = _make_HiPPO(N)
    P = np.sqrt(np.arange(N) + 0.5)
    B = np.sqrt(2.0 * np.arange(N) + 1.0)
    return hippo, P, B


def make_DPLR_HiPPO(N):
    A, P, B = _make_NPLR_HiPPO(N)
    S = A + P[:, None] * P[None, :]
    S_diag = np.diagonal(S)
    Lambda_real = np.mean(S_diag) + np.ones_like(S_diag)
    Lambda_imag, V = np.linalg.eigh(S * -1j)
    P = V.conj().T @ P.astype(np.complex128)
    B = V.conj().T @ B.astype(np.complex128)
    return Lambda_real + 1j * Lambda_imag, V


def init_s5_params(key, blocks, ssm_size, d_model, conj_sym, dt_max, dt_min):
    block_size = ssm_size // blocks
    Lambda, V = make_DPLR_HiPPO(block_size)
    local_block = block_size // 2 if conj_sym else block_size
    Lambda = Lambda[:local_block]
    V = V[:, :local_block]
    Lambda = np.tile(Lambda, blocks)                   # (P,)
    V_full = np.kron(np.eye(blocks), V)                # block_diag([V]*blocks)
    Vinv_full = np.kron(np.eye(blocks), V.conj().T)
    local_ssm = ssm_size * 2 if conj_sym else ssm_size

    k_b, k_c, k_d, k_s = jax.random.split(key, 4)
    B0 = np.asarray(jax.random.normal(k_b, (local_ssm, d_model), dtype=jnp.float32))
    VinvB = Vinv_full @ B0.astype(np.complex128)
    B_param = np.stack([VinvB.real, VinvB.imag], axis=-1).astype(np.float32)       # (N, d_model, 2)

    C0 = np.asarray(jax.random.normal(k_c, (d_model, local_ssm, 2), dtype=jnp.float32))
    CV = (C0[..., 0] + 1j * C0[..., 1]) @ V_full
    C_param = np.stack([CV.real, CV.imag], axis=-1).astype(np.float32)              # (d_model, N, 2)

    D_param = np.asarray(jax.random.normal(k_d, (d_model,), dtype=jnp.float32))     # (d_model,)
    step0 = np.asarray(jax.random.uniform(k_s, (local_ssm, 1), dtype=jnp.float32))
    step_param = np.log(step0 * (dt_max - dt_min) + dt_min).astype(np.float32)      # (N, 1)

    return dict(
        Lambda_re=Lambda.real.astype(np.float32),
        Lambda_im=Lambda.imag.astype(np.float32),
        B=B_param, C=C_param, D=D_param, step=step_param,
    )


# ----------------------------- Pallas kernel -----------------------------------

def s5_kernel(u_ref, w_in_ref, w_out_ref, d_ref, y_ref, state_ref):
    """One (tm, Dp) row tile.

    state = u @ W_in  -> packed [Re(Bu) | Im(Bu)]  (written first so its writeback
                          DMA can overlap the output matmul; parallel_scan in the
                          reference is an identity stub)
    y     = relu(state @ W_out + D * u)
    """
    u = u_ref[...]                                                       # (tm, Dp)
    state_ref[...] = jnp.dot(u, w_in_ref[...],
                             preferred_element_type=jnp.float32)         # (tm, NP2)
    bu = state_ref[...].astype(w_out_ref.dtype)                          # reuse, no 2nd copy
    y = (jnp.dot(bu, w_out_ref[...], preferred_element_type=jnp.float32)
         + d_ref[...] * u.astype(jnp.float32))                           # (tm, Dp)
    y_ref[...] = jnp.maximum(y, 0.0)                                     # activation='relu'


# ------------------------------ wrapper -----------------------------------------

_LANE = 128


def _round_up(x, m):
    return ((x + m - 1) // m) * m


def _physical_vmem_bytes():
    """Per-core VMEM capacity; conservative fallback if the query is unavailable."""
    try:
        info = pltpu.get_tpu_info()
        v = getattr(info, "vmem_capacity_bytes", None)
        if v:
            return int(v)
    except Exception:
        pass
    return 64 * 1024 * 1024   # v7x per-TC size -> safe everywhere


def _pick_tm(tm_req, M, Dp, NP2, in_itemsize, budget):
    """Largest multiple-of-8 row tile whose live VMEM fits the budget.

    Accounting includes the double-buffered resident weights, the double-buffered
    u/y/state tiles, the bf16 cast of the bu tile and the pre-relu f32 temp.
    """
    tm = min(_round_up(max(tm_req, 8), 8), _round_up(max(M, 8), 8))
    # Keep the 1-D grid at >= 4 steps when rows permit so v7x's two TensorCores
    # (grid sharded via dimension_semantics=("parallel",)) both get >= 2 steps.
    tm = min(tm, max(8, _round_up(-(-M // 4), 8)))

    # Grid-invariant W_in/W_out/D are still double-buffered by default.
    # TODO(synk): request pipeline_mode=pl.Buffered(1) for them once single
    # buffering of invariant operands is verified on this JAX version.
    param_bytes = 2 * (2 * Dp * NP2 * in_itemsize) + 2 * Dp * 4

    def tile_bytes(t):
        u_t = 2 * t * Dp * in_itemsize        # double-buffered input tile
        y_t = 2 * t * Dp * 4                  # double-buffered f32 y tile
        s_t = 2 * t * NP2 * 4                 # double-buffered f32 state tile
        tmp = t * NP2 * in_itemsize + t * Dp * 4   # bu cast + pre-relu temp
        return u_t + y_t + s_t + tmp

    while tm > 8 and param_bytes + tile_bytes(tm) > budget:
        tm = max(8, _round_up(tm // 2, 8))
    return tm


def s5_forward(params, u, *, clip_eigs=True, step_rescale=1.0, tm=1024,
               mxu_dtype=jnp.bfloat16, complex_state=True):
    """u: (batch, seq, d_model) float32. Returns (y, state) matching the torch module.

    mxu_dtype=jnp.bfloat16 (default) halves the u/weight HBM stream and runs the
    MXU at native rate; accumulation stays float32.  Pass jnp.float32 for exact
    parity with the f32 reference.  complex_state=False skips the wrapper-side
    complex materialization and returns the packed real (B, L, 2N) state buffer.
    """
    Bsz, L, d_model = u.shape

    Lambda_re = jnp.asarray(params["Lambda_re"])
    Lambda_im = jnp.asarray(params["Lambda_im"])
    if clip_eigs:
        Lambda = jnp.minimum(Lambda_re, -1e-4) + 1j * Lambda_im
    else:
        Lambda = Lambda_re + 1j * Lambda_im
    Bp = jnp.asarray(params["B"])
    Cp = jnp.asarray(params["C"])
    B_tilde = Bp[..., 0] + 1j * Bp[..., 1]                      # (N, d_model) complex
    C_tilde = Cp[..., 0] + 1j * Cp[..., 1]                      # (d_model, N) complex
    step = step_rescale * jnp.exp(jnp.squeeze(jnp.asarray(params["step"])))   # (N,)
    Lambda_bar = jnp.exp(Lambda * step)
    B_bar = ((1.0 / Lambda) * (Lambda_bar - 1.0))[:, None] * B_tilde          # (N, d_model)

    N = B_bar.shape[0]
    M = Bsz * L

    # Lane-dense padded sizes.  128-alignment is kept (not 256) because the kernel
    # is HBM-bound and wider padding would inflate the y/state write streams.
    Dp = _round_up(d_model, _LANE)
    NP2 = _round_up(2 * N, _LANE)          # packed [Re | Im] state width

    in_itemsize = np.dtype(mxu_dtype).itemsize
    phys_vmem = _physical_vmem_bytes()
    vmem_limit = max(32 * 1024 * 1024, phys_vmem - 16 * 1024 * 1024)
    budget = vmem_limit - 8 * 1024 * 1024
    tm = _pick_tm(tm, M, Dp, NP2, in_itemsize, budget)
    Mp = _round_up(M, tm)                  # pad rows only when needed (see below)

    # Fused, pre-transposed, zero-padded parameter operands (packed [Re | Im]).
    W_in = jnp.zeros((Dp, NP2), jnp.float32)
    W_in = W_in.at[:d_model, :N].set(jnp.real(B_bar).T)
    W_in = W_in.at[:d_model, N:2 * N].set(jnp.imag(B_bar).T)
    W_out = jnp.zeros((NP2, Dp), jnp.float32)
    W_out = W_out.at[:N, :d_model].set(jnp.real(C_tilde).T)
    W_out = W_out.at[N:2 * N, :d_model].set(-jnp.imag(C_tilde).T)
    Dvec = jnp.zeros((1, Dp), jnp.float32).at[0, :d_model].set(
        jnp.asarray(params["D"]).astype(jnp.float32))
    W_in = W_in.astype(mxu_dtype)
    W_out = W_out.astype(mxu_dtype)

    # Activations: cast to the MXU dtype *before* padding so the pad (if any)
    # moves half the bytes; skip the pad entirely when shapes already align.
    u2 = u.reshape(M, d_model)
    if u2.dtype != mxu_dtype:
        u2 = u2.astype(mxu_dtype)
    if Mp != M or Dp != d_model:
        u2 = jnp.pad(u2, ((0, Mp - M), (0, Dp - d_model)))

    full = lambda i: (0, 0)   # parameters stay VMEM-resident across the grid

    y2, state2 = pl.pallas_call(
        s5_kernel,
        out_shape=(
            jax.ShapeDtypeStruct((Mp, Dp), jnp.float32),
            jax.ShapeDtypeStruct((Mp, NP2), jnp.float32),
        ),
        grid_spec=pltpu.PrefetchScalarGridSpec(
            num_scalar_prefetch=0,
            grid=(Mp // tm,),
            in_specs=[
                pl.BlockSpec((tm, Dp), lambda i: (i, 0)),    # u row tiles (pipelined)
                pl.BlockSpec((Dp, NP2), full),               # W_in  (resident)
                pl.BlockSpec((NP2, Dp), full),               # W_out (resident)
                pl.BlockSpec((1, Dp), full),                 # D     (resident)
            ],
            out_specs=(
                pl.BlockSpec((tm, Dp), lambda i: (i, 0)),        # y
                pl.BlockSpec((tm, NP2), lambda i: (i, 0)),       # packed [Re|Im] Bu
            ),
        ),
        compiler_params=pltpu.CompilerParams(
            dimension_semantics=("parallel",),        # megacore / v7x 2-TC sharding
            vmem_limit_bytes=int(vmem_limit),
        ),
    )(u2, W_in, W_out, Dvec)

    y = y2[:M, :d_model].reshape(Bsz, L, d_model)
    if complex_state:
        state = jax.lax.complex(state2[:M, :N],
                                state2[:M, N:2 * N]).reshape(Bsz, L, N)
    else:
        state = state2[:M, :2 * N].reshape(Bsz, L, 2 * N)
    return y, state


# ------------------------- pure-JAX reference (for checking) -------------------

def s5_forward_ref(params, u, *, clip_eigs=True, step_rescale=1.0):
    Lambda_re = jnp.asarray(params["Lambda_re"])
    Lambda_im = jnp.asarray(params["Lambda_im"])
    Lambda = (jnp.minimum(Lambda_re, -1e-4) if clip_eigs else Lambda_re) + 1j * Lambda_im
    Bp = jnp.asarray(params["B"])
    Cp = jnp.asarray(params["C"])
    B_tilde = Bp[..., 0] + 1j * Bp[..., 1]
    C_tilde = Cp[..., 0] + 1j * Cp[..., 1]
    step = step_rescale * jnp.exp(jnp.squeeze(jnp.asarray(params["step"])))
    Lambda_bar = jnp.exp(Lambda * step)
    B_bar = ((1.0 / Lambda) * (Lambda_bar - 1.0))[:, None] * B_tilde
    Bu = u.astype(jnp.complex64) @ jnp.swapaxes(B_bar, 0, 1).astype(jnp.complex64)
    state = Bu  # parallel_scan stub: returns inputs
    y = jnp.real(state @ jnp.swapaxes(C_tilde, 0, 1).astype(jnp.complex64)) \
        + jnp.asarray(params["D"]) * u
    y = jnp.maximum(y, 0.0)
    return y, state


# ---------------------------------- main ----------------------------------------

if __name__ == "__main__":
    # Small, forward-consistent shapes.
    blocks, ssm_size, d_model = 4, 32, 32
    conj_sym, clip_eigs = False, True
    dt_max, dt_min, step_rescale = 0.1, 0.001, 1.0
    batch, seq = 2, 8

    key = jax.random.PRNGKey(0)
    k_params, k_u = jax.random.split(key)
    params = init_s5_params(k_params, blocks, ssm_size, d_model, conj_sym, dt_max, dt_min)
    u = jax.random.normal(k_u, (batch, seq, d_model), dtype=jnp.float32)

    y_ref, state_ref = s5_forward_ref(params, u, clip_eigs=clip_eigs,
                                      step_rescale=step_rescale)

    # Default path: bf16 MXU operands (f32 accumulation).  Check against the f32
    # reference with a tolerance scaled to the data magnitude.
    y, state = s5_forward(params, u, clip_eigs=clip_eigs, step_rescale=step_rescale)
    jax.block_until_ready((y, state))
    y_np, state_np = np.asarray(y), np.asarray(state)
    y_r, state_r = np.asarray(y_ref), np.asarray(state_ref)
    assert np.max(np.abs(y_np - y_r)) <= 0.05 * np.max(np.abs(y_r)) + 1e-4, "bf16 y mismatch"
    assert np.max(np.abs(state_np - state_r)) <= 0.05 * np.max(np.abs(state_r)) + 1e-4, \
        "bf16 state mismatch"

    # Exact-parity path: f32 operands, tight tolerance.
    y32, state32 = s5_forward(params, u, clip_eigs=clip_eigs,
                              step_rescale=step_rescale, mxu_dtype=jnp.float32)
    jax.block_until_ready((y32, state32))
    np.testing.assert_allclose(np.asarray(y32), y_r, rtol=1e-4, atol=1e-4)
    np.testing.assert_allclose(np.asarray(state32), state_r, rtol=1e-4, atol=1e-4)

    print("KERNEL_OK")
</pallas_src>

<mosaic_0001>
module attributes {stable_mosaic.version = 11 : i64} {
  func.func @s5_kernel(%arg0: i32, %arg1: memref<8x128xbf16, #tpu.memory_space<vmem>>, %arg2: memref<128x128xbf16, #tpu.memory_space<vmem>>, %arg3: memref<128x128xbf16, #tpu.memory_space<vmem>>, %arg4: memref<1x128xf32, #tpu.memory_space<vmem>>, %arg5: memref<8x128xf32, #tpu.memory_space<vmem>>, %arg6: memref<8x128xf32, #tpu.memory_space<vmem>>) attributes {dimension_semantics = [#tpu.dimension_semantics<parallel>], iteration_bounds = array<i64: 2>, scalar_prefetch = 0 : i64, scratch_operands = 0 : i64, tpu.core_type = #tpu.core_type<tc>, window_params = [{transform_indices = @transform_0, window_bounds = array<i64: 8, 128>}, {pipeline_mode = #tpu.pipeline_mode<synchronous>, transform_indices = @transform_1, window_bounds = array<i64: 128, 128>}, {pipeline_mode = #tpu.pipeline_mode<synchronous>, transform_indices = @transform_2, window_bounds = array<i64: 128, 128>}, {pipeline_mode = #tpu.pipeline_mode<synchronous>, transform_indices = @transform_3, window_bounds = array<i64: 1, 128>}, {transform_indices = @transform_4, window_bounds = array<i64: 8, 128>}, {transform_indices = @transform_5, window_bounds = array<i64: 8, 128>}]} {
    %c0 = arith.constant 0 : index
    %c0_0 = arith.constant 0 : index
    %0 = vector.load %arg1[%c0, %c0_0] : memref<8x128xbf16, #tpu.memory_space<vmem>>, vector<8x128xbf16>
    %c0_1 = arith.constant 0 : index
    %c0_2 = arith.constant 0 : index
    %1 = vector.load %arg2[%c0_1, %c0_2] : memref<128x128xbf16, #tpu.memory_space<vmem>>, vector<128x128xbf16>
    %cst = arith.constant dense<0.000000e+00> : vector<8x128xf32>
    %2 = tpu.matmul %0, %1, %cst {dimension_numbers = #tpu.dot_dimension_numbers<[1], [0], [0], [1], [0, 0, 1, 1], [], []>} : vector<8x128xbf16>, vector<128x128xbf16>, vector<8x128xf32> -> vector<8x128xf32>
    %c0_3 = arith.constant 0 : index
    %c0_4 = arith.constant 0 : index
    %3 = vector.load %arg6[%c0_3, %c0_4] : memref<8x128xf32, #tpu.memory_space<vmem>>, vector<8x128xf32>
    tpu.vector_store %arg6[%c0_3, %c0_4], %2 {strides = array<i32>} : memref<8x128xf32, #tpu.memory_space<vmem>>, vector<8x128xf32>,
    %c0_5 = arith.constant 0 : index
    %c0_6 = arith.constant 0 : index
    %4 = vector.load %arg6[%c0_5, %c0_6] : memref<8x128xf32, #tpu.memory_space<vmem>>, vector<8x128xf32>
    %5 = arith.truncf %4 : vector<8x128xf32> to vector<8x128xbf16>
    %c0_7 = arith.constant 0 : index
    %c0_8 = arith.constant 0 : index
    %6 = vector.load %arg3[%c0_7, %c0_8] : memref<128x128xbf16, #tpu.memory_space<vmem>>, vector<128x128xbf16>
    %cst_9 = arith.constant dense<0.000000e+00> : vector<8x128xf32>
    %7 = tpu.matmul %5, %6, %cst_9 {dimension_numbers = #tpu.dot_dimension_numbers<[1], [0], [0], [1], [0, 0, 1, 1], [], []>} : vector<8x128xbf16>, vector<128x128xbf16>, vector<8x128xf32> -> vector<8x128xf32>
    %c0_10 = arith.constant 0 : index
    %c0_11 = arith.constant 0 : index
    %8 = vector.load %arg4[%c0_10, %c0_11] : memref<1x128xf32, #tpu.memory_space<vmem>>, vector<1x128xf32>
    %9 = arith.extf %0 : vector<8x128xbf16> to vector<8x128xf32>
    %10 = vector.broadcast %8 : vector<1x128xf32> to vector<8x128xf32>
    %11 = arith.mulf %10, %9 : vector<8x128xf32>
    %12 = arith.addf %7, %11 : vector<8x128xf32>
    %cst_12 = arith.constant 0.000000e+00 : f32
    %13 = vector.broadcast %cst_12 : f32 to vector<8x128xf32>
    %14 = arith.maximumf %12, %13 : vector<8x128xf32>
    %c0_13 = arith.constant 0 : index
    %c0_14 = arith.constant 0 : index
    %15 = vector.load %arg5[%c0_13, %c0_14] : memref<8x128xf32, #tpu.memory_space<vmem>>, vector<8x128xf32>
    tpu.vector_store %arg5[%c0_13, %c0_14], %14 {strides = array<i32>} : memref<8x128xf32, #tpu.memory_space<vmem>>, vector<8x128xf32>,
    return
  }
  func.func @transform_0(%arg0: i32) -> (i32, i32) {
    %c0_i32 = arith.constant 0 : i32
    %c0_i32_0 = arith.constant 0 : i32
    return %arg0, %c0_i32 : i32, i32
  }
  func.func @transform_1(%arg0: i32) -> (i32, i32) {
    %c0_i32 = arith.constant 0 : i32
    %c0_i32_0 = arith.constant 0 : i32
    %c0_i32_1 = arith.constant 0 : i32
    return %c0_i32, %c0_i32_0 : i32, i32
  }
  func.func @transform_2(%arg0: i32) -> (i32, i32) {
    %c0_i32 = arith.constant 0 : i32
    %c0_i32_0 = arith.constant 0 : i32
    %c0_i32_1 = arith.constant 0 : i32
    return %c0_i32, %c0_i32_0 : i32, i32
  }
  func.func @transform_3(%arg0: i32) -> (i32, i32) {
    %c0_i32 = arith.constant 0 : i32
    %c0_i32_0 = arith.constant 0 : i32
    %c0_i32_1 = arith.constant 0 : i32
    return %c0_i32, %c0_i32_0 : i32, i32
  }
  func.func @transform_4(%arg0: i32) -> (i32, i32) {
    %c0_i32 = arith.constant 0 : i32
    %c0_i32_0 = arith.constant 0 : i32
    return %arg0, %c0_i32 : i32, i32
  }
  func.func @transform_5(%arg0: i32) -> (i32, i32) {
    %c0_i32 = arith.constant 0 : i32
    %c0_i32_0 = arith.constant 0 : i32
    return %arg0, %c0_i32 : i32, i32
  }
}

</mosaic_0001>

<llo_original>
// kernel: tpu_custom_call.1
$region0: #{tpu_custom_call.1}
  #allocation0 [shape = 'u32[]', space=smem, size = 0x4, offset = 0x4, fixed_abs, tag = 'smem constant byte address 0x4 - core index']
  #allocation1 [shape = 'u32[144,128]{1,0:T(1,128)}', space=vmem, size = 0x12000, scoped, tag = 'internal scratch']
  %s0 = inlined_call_operand.hbm [shape: bf16[16,128], index: 0, kind: input, shape index: {}]
  %s1 = inlined_call_operand.hbm [shape: bf16[128,128], index: 1, kind: input, shape index: {}]
  %s2 = inlined_call_operand.hbm [shape: bf16[128,128], index: 2, kind: input, shape index: {}]
  %s3 = inlined_call_operand.vmem [shape: f32[1,128], index: 3, kind: input, shape index: {}]
  %s4 = inlined_call_operand.hbm [shape: f32[16,128], index: 4, kind: output, shape index: {0}]
  %s5 = inlined_call_operand.hbm [shape: f32[16,128], index: 5, kind: output, shape index: {1}]
  %6 = xla_tuple %s4, %s5
  %s7 = sld [smem:[#allocation0]]
  $region69: #{tpu_custom_call.1} parent=0
    _
  %s9 = ssub.s32 1, %s7
  %s10 = scalar_select 0, %s9, %s7
  $region1: #{tpu_custom_call.1} parent=0
    #allocation2 [shape = 'u8[4096]{0}', space=vmem, size = 0x1000, scoped, tag = 'input window, operand 0']
    #allocation3 [shape = 's32[2]{0}', space=sflag, size = 0x8, scoped, tag = 'scoped memory for tpu_custom_call.1']
    #allocation4 [shape = 's32[2]{0}', space=sflag, size = 0x8, scoped, tag = 'scoped memory for tpu_custom_call.1']
    #allocation5 [shape = 'u8[32768]{0}', space=vmem, size = 0x8000, scoped, tag = 'input window, operand 1, single buffered']
    #allocation6 [shape = 's32[1]{0}', space=sflag, size = 0x4, scoped, tag = 'scoped memory for tpu_custom_call.1']
    #allocation7 [shape = 'u8[32768]{0}', space=vmem, size = 0x8000, scoped, tag = 'input window, operand 2, single buffered']
    #allocation8 [shape = 'u8[8192]{0}', space=vmem, size = 0x2000, scoped, tag = 'output window, operand 0']
    #allocation9 [shape = 'u8[8192]{0}', space=vmem, size = 0x2000, scoped, tag = 'output window, operand 1']
    #allocation10 [shape = 's32[2]{0}', space=sflag, size = 0x8, scoped, tag = 'scoped memory for tpu_custom_call.1']
    %11 = vsyncpa [#allocation3], 0
    %s12 = scalar_lea.sflag [#allocation3], 1
    %13 = vsyncpa %s12, 0
    %14 = vsyncpa [#allocation6], 0
    %15 = vsyncpa [#allocation4], 0
    %s16 = scalar_lea.sflag [#allocation4], 1
    %17 = vsyncpa %s16, 0
    %18 = vsyncpa [#allocation10], 0
    %s19 = scalar_lea.sflag [#allocation10], 1
    %20 = vsyncpa %s19, 0
    loop: start=0, step=1, limit=4
    $region2: #{tpu_custom_call.1} parent=1 // loop_pre_header
      _
    $region3: #{tpu_custom_call.1} parent=1 // loop_header
      %s22 = sphi 0, %s26
      %p23 = scmp.ge.s32.totalorder %s22, 4
      %s32 = sphi 0, %s34
      %s35 = sphi 0, %s32
      %s36 = sphi 0, %s35
      %s52 = sphi 0, %s36
      %s56 = sphi 0, %s56
      %s58 = sphi 0, %s56
      %s59 = sphi 0, %s58
      %s73 = sphi 0, %s59
      %s77 = sphi 0, %s77
      %s79 = sphi 0, %s77
      %s80 = sphi 0, %s79
      %s94 = sphi 0, %s80
      %s98 = sphi 0, %s98
      %s100 = sphi 0, %s98
      %s101 = sphi 0, %s100
      %s115 = sphi 0, %s101
      %s121 = sphi 0, %s123
      %s124 = sphi 0, %s121
      %s125 = sphi 0, %s124
      %s141 = sphi 0, %s125
      %s147 = sphi 0, %s149
      %s150 = sphi 0, %s147
      %s151 = sphi 0, %s150
      %s167 = sphi 0, %s151
    $region4: #{tpu_custom_call.1} parent=1 // loop_header_branch
      %25 = sbr.rel (%p23) target = $region8
    $region5: #{tpu_custom_call.1} parent=1 // loop_body
      %s27 = ssub.s32 %s22, 1
      %s28 = ssub.s32 %s22, 2
      %s29 = sadd.s32 %s22, 1
      %s30 = ssub.s32 %s22, %s29
      %p31 = scmp.eq.s32.totalorder %s30, 0
      %s33 = sadd.s32 %s32, 1
      %s34 = scalar_select %p31, %s32, %s33
      %p37 = pneg %p31
      %p38 = scmp.eq.s32.totalorder %s22, 1
      %p39 = por %p37, %p38
      %p40 = scmp.ne.s32.totalorder %s32, %s35
      %p41 = scmp.eq.s32.totalorder %s22, 0
      %p42 = por %p40, %p41
      %p43 = scmp.ne.s32.totalorder %s32, %s35
      %p44 = scmp.eq.s32.totalorder %s27, 1
      %p45 = por %p43, %p44
      %p46 = scmp.ne.s32.totalorder %s35, %s36
      %p47 = scmp.eq.s32.totalorder %s27, 0
      %p48 = por %p46, %p47
      %p49 = scmp.ne.s32.totalorder %s35, %s36
      %p50 = scmp.eq.s32.totalorder %s28, 1
      %p51 = por %p49, %p50
      %p53 = scmp.ne.s32.totalorder %s36, %s52
      %p54 = scmp.eq.s32.totalorder %s28, 0
      %p55 = por %p53, %p54
      %s57 = sadd.s32 %s56, 1
      %p60 = scmp.eq.s32.totalorder %s22, 1
      %p61 = scmp.ne.s32.totalorder %s56, %s58
      %p62 = scmp.eq.s32.totalorder %s22, 0
      %p63 = por %p61, %p62
      %p64 = scmp.ne.s32.totalorder %s56, %s58
      %p65 = scmp.eq.s32.totalorder %s27, 1
      %p66 = por %p64, %p65
      %p67 = scmp.ne.s32.totalorder %s58, %s59
      %p68 = scmp.eq.s32.totalorder %s27, 0
      %p69 = por %p67, %p68
      %p70 = scmp.ne.s32.totalorder %s58, %s59
      %p71 = scmp.eq.s32.totalorder %s28, 1
      %p72 = por %p70, %p71
      %p74 = scmp.ne.s32.totalorder %s59, %s73
      %p75 = scmp.eq.s32.totalorder %s28, 0
      %p76 = por %p74, %p75
      %s78 = sadd.s32 %s77, 1
      %p81 = scmp.eq.s32.totalorder %s22, 1
      %p82 = scmp.ne.s32.totalorder %s77, %s79
      %p83 = scmp.eq.s32.totalorder %s22, 0
      %p84 = por %p82, %p83
      %p85 = scmp.ne.s32.totalorder %s77, %s79
      %p86 = scmp.eq.s32.totalorder %s27, 1
      %p87 = por %p85, %p86
      %p88 = scmp.ne.s32.totalorder %s79, %s80
      %p89 = scmp.eq.s32.totalorder %s27, 0
      %p90 = por %p88, %p89
      %p91 = scmp.ne.s32.totalorder %s79, %s80
      %p92 = scmp.eq.s32.totalorder %s28, 1
      %p93 = por %p91, %p92
      %p95 = scmp.ne.s32.totalorder %s80, %s94
      %p96 = scmp.eq.s32.totalorder %s28, 0
      %p97 = por %p95, %p96
      %s99 = sadd.s32 %s98, 1
      %p102 = scmp.eq.s32.totalorder %s22, 1
      %p103 = scmp.ne.s32.totalorder %s98, %s100
      %p104 = scmp.eq.s32.totalorder %s22, 0
      %p105 = por %p103, %p104
      %p106 = scmp.ne.s32.totalorder %s98, %s100
      %p107 = scmp.eq.s32.totalorder %s27, 1
      %p108 = por %p106, %p107
      %p109 = scmp.ne.s32.totalorder %s100, %s101
      %p110 = scmp.eq.s32.totalorder %s27, 0
      %p111 = por %p109, %p110
      %p112 = scmp.ne.s32.totalorder %s100, %s101
      %p113 = scmp.eq.s32.totalorder %s28, 1
      %p114 = por %p112, %p113
      %p116 = scmp.ne.s32.totalorder %s101, %s115
      %p117 = scmp.eq.s32.totalorder %s28, 0
      %p118 = por %p116, %p117
      %s119 = ssub.s32 %s22, %s29
      %p120 = scmp.eq.s32.totalorder %s119, 0
      %s122 = sadd.s32 %s121, 1
      %s123 = scalar_select %p120, %s121, %s122
      %p126 = pneg %p120
      %p127 = scmp.eq.s32.totalorder %s22, 1
      %p128 = por %p126, %p127
      %p129 = scmp.ne.s32.totalorder %s121, %s124
      %p130 = scmp.eq.s32.totalorder %s22, 0
      %p131 = por %p129, %p130
      %p132 = scmp.ne.s32.totalorder %s121, %s124
      %p133 = scmp.eq.s32.totalorder %s27, 1
      %p134 = por %p132, %p133
      %p135 = scmp.ne.s32.totalorder %s124, %s125
      %p136 = scmp.eq.s32.totalorder %s27, 0
      %p137 = por %p135, %p136
      %p138 = scmp.ne.s32.totalorder %s124, %s125
      %p139 = scmp.eq.s32.totalorder %s28, 1
      %p140 = por %p138, %p139
      %p142 = scmp.ne.s32.totalorder %s125, %s141
      %p143 = scmp.eq.s32.totalorder %s28, 0
      %p144 = por %p142, %p143
      %s145 = ssub.s32 %s22, %s29
      %p146 = scmp.eq.s32.totalorder %s145, 0
      %s148 = sadd.s32 %s147, 1
      %s149 = scalar_select %p146, %s147, %s148
      %p152 = pneg %p146
      %p153 = scmp.eq.s32.totalorder %s22, 1
      %p154 = por %p152, %p153
      %p155 = scmp.ne.s32.totalorder %s147, %s150
      %p156 = scmp.eq.s32.totalorder %s22, 0
      %p157 = por %p155, %p156
      %p158 = scmp.ne.s32.totalorder %s147, %s150
      %p159 = scmp.eq.s32.totalorder %s27, 1
      %p160 = por %p158, %p159
      %p161 = scmp.ne.s32.totalorder %s150, %s151
      %p162 = scmp.eq.s32.totalorder %s27, 0
      %p163 = por %p161, %p162
      %p164 = scmp.ne.s32.totalorder %s150, %s151
      %p165 = scmp.eq.s32.totalorder %s28, 1
      %p166 = por %p164, %p165
      %p168 = scmp.ne.s32.totalorder %s151, %s167
      %p169 = scmp.eq.s32.totalorder %s28, 0
      %p170 = por %p168, %p169
      %p171 = scmp.le.s32.totalorder 1, %s22
      %p172 = scmp.lt.s32.totalorder %s22, 3
      %p173 = pnand %p171, %p172
      %p174 = pneg %p173
      // Predicated region
      $region9: #{tpu_custom_call.1} parent=5 // pred_check
        _
      $region10: #{tpu_custom_call.1} parent=5 // pred_check_branch
        %176 = sbr.rel (%p173) target = $region12
      $region11: #{tpu_custom_call.1} parent=5 // pred_region
        %s177 = ssub.s32 %s22, 1
        // Predicated region
        $region13: #{tpu_custom_call.1} parent=11 // pred_check
          %p178 = pneg %p69
        $region14: #{tpu_custom_call.1} parent=11 // pred_check_branch
          %180 = sbr.rel (%p178) target = $region16
        $region15: #{tpu_custom_call.1} parent=11 // pred_region
          %s182 = ssub.s32 1024, 1024
          %183 = vsyncadd [#allocation6], %s182
          %s184 = sshll.u32 [#allocation5], 4
          %s185 = int_to_ptr.vmem [resolvable:$true] %s184
          %190 = dma.hbm_to_vmem [thread:$0]  %s1, 1024, %s185, [#allocation6], 64, 64, 4
        $region16: #{tpu_custom_call.1} parent=11 // pred_fallthru
          _
        // Predicated region
        $region17: #{tpu_custom_call.1} parent=11 // pred_check
          %p191 = pneg %p90
        $region18: #{tpu_custom_call.1} parent=11 // pred_check_branch
          %193 = sbr.rel (%p191) target = $region20
        $region19: #{tpu_custom_call.1} parent=11 // pred_region
          %s195 = ssub.s32 1024, 1024
          %196 = vsyncadd [#allocation6], %s195
          %s197 = sshll.u32 [#allocation7], 4
          %s198 = int_to_ptr.vmem [resolvable:$true] %s197
          %203 = dma.hbm_to_vmem [thread:$0]  %s2, 1024, %s198, [#allocation6], 64, 64, 4
        $region20: #{tpu_custom_call.1} parent=11 // pred_fallthru
          _
        // Predicated region
        $region21: #{tpu_custom_call.1} parent=11 // pred_check
          %p204 = pneg %p111
        $region22: #{tpu_custom_call.1} parent=11 // pred_check_branch
          %206 = sbr.rel (%p204) target = $region24
        $region23: #{tpu_custom_call.1} parent=11 // pred_region
          _
        $region24: #{tpu_custom_call.1} parent=11 // pred_fallthru
          _
      $region12: #{tpu_custom_call.1} parent=5 // pred_fallthru
        _
      %p207 = scmp.lt.s32.totalorder %s22, 2
      // Predicated region
      $region25: #{tpu_custom_call.1} parent=5 // pred_check
        %p208 = pneg %p207
      $region26: #{tpu_custom_call.1} parent=5 // pred_check_branch
        %210 = sbr.rel (%p208) target = $region28
      $region27: #{tpu_custom_call.1} parent=5 // pred_region
        // Predicated region
        $region29: #{tpu_custom_call.1} parent=27 // pred_check
          %p211 = pneg %p42
        $region30: #{tpu_custom_call.1} parent=27 // pred_check_branch
          %213 = sbr.rel (%p211) target = $region32
        $region31: #{tpu_custom_call.1} parent=27 // pred_region
          %s214 = sand.u32 %s32, 1
          %s215 = scalar_lea.sflag [#allocation3], %s214
          %s216 = sand.u32 %s32, 1
          %s217 = smul.addr %s216, 4
          %s218 = scalar_lea.vmem [#allocation2], %s217
          %s220 = ssub.s32 64, 64
          %221 = vsyncadd %s215, %s220
          %s222 = smul.addr %s22, 64
          %s223 = scalar_lea.hbm %s0, %s222
          %s225 = sshll.u32 %s218, 4
          %s226 = int_to_ptr.vmem [resolvable:$true] %s225
          %228 = dma.hbm_to_vmem [thread:$0]  %s223, 64, %s226, %s215
        $region32: #{tpu_custom_call.1} parent=27 // pred_fallthru
          _
      $region28: #{tpu_custom_call.1} parent=5 // pred_fallthru
        _
      %p229 = scmp.le.s32.totalorder 1, %s22
      %p230 = scmp.lt.s32.totalorder %s22, 3
      %p231 = pnand %p229, %p230
      %p232 = pneg %p231
      // Predicated region
      $region33: #{tpu_custom_call.1} parent=5 // pred_check
        _
      $region34: #{tpu_custom_call.1} parent=5 // pred_check_branch
        %234 = sbr.rel (%p231) target = $region36
      $region35: #{tpu_custom_call.1} parent=5 // pred_region
        %s235 = ssub.s32 %s22, 1
        %s236 = sand.u32 %s35, 1
        %s237 = scalar_lea.sflag [#allocation3], %s236
        %s238 = sand.u32 %s35, 1
        %s239 = smul.addr %s238, 4
        %s240 = scalar_lea.vmem [#allocation2], %s239
        // Predicated region
        $region37: #{tpu_custom_call.1} parent=35 // pred_check
          %p241 = pneg %p48
        $region38: #{tpu_custom_call.1} parent=35 // pred_check_branch
          %243 = sbr.rel (%p241) target = $region40
        $region39: #{tpu_custom_call.1} parent=35 // pred_region
          %244 = dma.done %s237, 64
        $region40: #{tpu_custom_call.1} parent=35 // pred_fallthru
          _
        // Predicated region
        $region41: #{tpu_custom_call.1} parent=35 // pred_check
          %p245 = pneg %p69
        $region42: #{tpu_custom_call.1} parent=35 // pred_check_branch
          %247 = sbr.rel (%p245) target = $region44
        $region43: #{tpu_custom_call.1} parent=35 // pred_region
          %248 = dma.done [#allocation6], 1024
        $region44: #{tpu_custom_call.1} parent=35 // pred_fallthru
          _
        // Predicated region
        $region45: #{tpu_custom_call.1} parent=35 // pred_check
          %p249 = pneg %p90
        $region46: #{tpu_custom_call.1} parent=35 // pred_check_branch
          %251 = sbr.rel (%p249) target = $region48
        $region47: #{tpu_custom_call.1} parent=35 // pred_region
          %252 = dma.done [#allocation6], 1024
        $region48: #{tpu_custom_call.1} parent=35 // pred_fallthru
          _
        %s253 = sand.u32 %s35, 1
        %s254 = scalar_lea.sflag [#allocation3], %s253
        %s255 = sand.u32 %s35, 1
        %s256 = smul.addr %s255, 4
        %s257 = scalar_lea.vmem [#allocation2], %s256
        %p258 = pneg %p48
        %p259 = pneg %p45
        %p260 = pneg %p69
        %p261 = pneg %p66
        %p262 = pneg %p90
        %p263 = pneg %p87
        %p264 = pneg %p111
        %p265 = pneg %p108
        %p266 = pneg %p137
        %p267 = pneg %p134
        %s268 = sand.u32 %s124, 1
        %s269 = scalar_lea.sflag [#allocation4], %s268
        %s270 = sand.u32 %s124, 1
        %s271 = smul.addr %s270, 8
        %s272 = scalar_lea.vmem [#allocation8], %s271
        %p273 = pneg %p163
        %p274 = pneg %p160
        %s275 = sand.u32 %s150, 1
        %s276 = scalar_lea.sflag [#allocation10], %s275
        %s277 = sand.u32 %s150, 1
        %s278 = smul.addr %s277, 8
        %s279 = scalar_lea.vmem [#allocation9], %s278
        %v281 = vld [vmem:[%s240] sm:$0xf]
        %v282 = vld [vmem:[#allocation5] sm:$0xf]
        %v283 = vld [vmem:[#allocation5 + $0x4] sm:$0xf]
        %v284 = vld [vmem:[#allocation5 + $0x8] sm:$0xf]
        %v285 = vld [vmem:[#allocation5 + $0xc] sm:$0xf]
        %v286 = vld [vmem:[#allocation5 + $0x10] sm:$0xf]
        %v287 = vld [vmem:[#allocation5 + $0x14] sm:$0xf]
        %v288 = vld [vmem:[#allocation5 + $0x18] sm:$0xf]
        %v289 = vld [vmem:[#allocation5 + $0x1c] sm:$0xf]
        %v290 = vld [vmem:[#allocation5 + $0x20] sm:$0xf]
        %v291 = vld [vmem:[#allocation5 + $0x24] sm:$0xf]
        %v292 = vld [vmem:[#allocation5 + $0x28] sm:$0xf]
        %v293 = vld [vmem:[#allocation5 + $0x2c] sm:$0xf]
        %v294 = vld [vmem:[#allocation5 + $0x30] sm:$0xf]
        %v295 = vld [vmem:[#allocation5 + $0x34] sm:$0xf]
        %v296 = vld [vmem:[#allocation5 + $0x38] sm:$0xf]
        %v297 = vld [vmem:[#allocation5 + $0x3c] sm:$0xf]
        %v314 = vunpack.c.l.b16 %v282
        %v315 = vunpack.c.l.b16 %v283
        %v316 = vunpack.c.l.b16 %v284
        %v317 = vunpack.c.l.b16 %v285
        %v318 = vunpack.c.l.b16 %v286
        %v319 = vunpack.c.l.b16 %v287
        %v320 = vunpack.c.l.b16 %v288
        %v321 = vunpack.c.l.b16 %v289
        %v322 = vunpack.c.l.b16 %v290
        %v323 = vunpack.c.l.b16 %v291
        %v324 = vunpack.c.l.b16 %v292
        %v325 = vunpack.c.l.b16 %v293
        %v326 = vunpack.c.l.b16 %v294
        %v327 = vunpack.c.l.b16 %v295
        %v328 = vunpack.c.l.b16 %v296
        %v329 = vunpack.c.l.b16 %v297
        %v330 = vpack.c.b16 %v315, %v314
        %v331 = vpack.c.b16 %v317, %v316
        %v332 = vpack.c.b16 %v319, %v318
        %v333 = vpack.c.b16 %v321, %v320
        %v334 = vpack.c.b16 %v323, %v322
        %v335 = vpack.c.b16 %v325, %v324
        %v336 = vpack.c.b16 %v327, %v326
        %v337 = vpack.c.b16 %v329, %v328
        %346 = vmatprep.subr.bf16.mxu0 0
        %347 = vmatpush1.bf16.msra.mxu0 %v330
        %348 = vmatprep.subr.bf16.mxu0 0
        %349 = vmatpush1.bf16.msra.mxu0 %v331
        %350 = vmatprep.subr.bf16.mxu0 0
        %351 = vmatpush1.bf16.msra.mxu0 %v332
        %352 = vmatprep.subr.bf16.mxu0 0
        %353 = vmatpush1.bf16.msra.mxu0 %v333
        %354 = vmatprep.subr.bf16.mxu0 0
        %355 = vmatpush1.bf16.msra.mxu0 %v334
        %356 = vmatprep.subr.bf16.mxu0 0
        %357 = vmatpush1.bf16.msra.mxu0 %v335
        %358 = vmatprep.subr.bf16.mxu0 0
        %359 = vmatpush1.bf16.msra.mxu0 %v336
        %360 = vmatprep.subr.bf16.mxu0 0
        %361 = vmatpush1.bf16.msra.mxu0 %v337
        %362 = vmatprep.subr.bf16.mxu0 0
        %363 = vmatpush1.bf16.msra.mxu0 0
        %364 = vmatprep.subr.bf16.mxu0 0
        %365 = vmatpush1.bf16.msra.mxu0 0
        %366 = vmatprep.subr.bf16.mxu0 0
        %367 = vmatpush1.bf16.msra.mxu0 0
        %368 = vmatprep.subr.bf16.mxu0 0
        %369 = vmatpush1.bf16.msra.mxu0 0
        %370 = vmatprep.subr.bf16.mxu0 0
        %371 = vmatpush1.bf16.msra.mxu0 0
        %372 = vmatprep.subr.bf16.mxu0 0
        %373 = vmatpush1.bf16.msra.mxu0 0
        %374 = vmatprep.subr.bf16.mxu0 0
        %375 = vmatpush1.bf16.msra.mxu0 0
        %376 = vmatprep.subr.bf16.mxu0 0
        %377 = vmatpush1.bf16.msra.mxu0 0
        %378 = vmatprep.mubr.bf16.mxu0 0
        %379 = vmatmul.mubr.bf16.gmra.mrb[0].mxu0 %v281
        %v380 = vpop.f32.mrb[0].mxu0
        %v381 = vadd.f32 0.0, %v380
        %v382 = vpop.f32.mrb[0].mxu0
        %v383 = vpop.f32.mrb[0].mxu0
        %v384 = vpop.f32.mrb[0].mxu0
        %385 = vdwg.mxu0
        %386 = vst [vmem:[%s279] sm:$0xff] %v381
        %v387 = vld [vmem:[%s279] sm:$0xff]
        %v388 = vpack.c.bf16 %v387, %v387
        %v389 = vld [vmem:[#allocation7] sm:$0xf]
        %v390 = vld [vmem:[#allocation7 + $0x4] sm:$0xf]
        %v391 = vld [vmem:[#allocation7 + $0x8] sm:$0xf]
        %v392 = vld [vmem:[#allocation7 + $0xc] sm:$0xf]
        %v393 = vld [vmem:[#allocation7 + $0x10] sm:$0xf]
        %v394 = vld [vmem:[#allocation7 + $0x14] sm:$0xf]
        %v395 = vld [vmem:[#allocation7 + $0x18] sm:$0xf]
        %v396 = vld [vmem:[#allocation7 + $0x1c] sm:$0xf]
        %v397 = vld [vmem:[#allocation7 + $0x20] sm:$0xf]
        %v398 = vld [vmem:[#allocation7 + $0x24] sm:$0xf]
        %v399 = vld [vmem:[#allocation7 + $0x28] sm:$0xf]
        %v400 = vld [vmem:[#allocation7 + $0x2c] sm:$0xf]
        %v401 = vld [vmem:[#allocation7 + $0x30] sm:$0xf]
        %v402 = vld [vmem:[#allocation7 + $0x34] sm:$0xf]
        %v403 = vld [vmem:[#allocation7 + $0x38] sm:$0xf]
        %v404 = vld [vmem:[#allocation7 + $0x3c] sm:$0xf]
        %v405 = vld [vmem:[%s3] sm:$0x1]
        %v406 = vunpack.c.l.bf16 %v281
        %v408 = vlaneseq
        %v409 = vshrl.u32 %v408, 7
        %v410 = vsub.s32 0, %v409
        %v411 = vrot.slane %v405, %v410
        %v413 = vmul.f32 %v411, %v406
        %v430 = vunpack.c.l.b16 %v389
        %v431 = vunpack.c.l.b16 %v390
        %v432 = vunpack.c.l.b16 %v391
        %v433 = vunpack.c.l.b16 %v392
        %v434 = vunpack.c.l.b16 %v393
        %v435 = vunpack.c.l.b16 %v394
        %v436 = vunpack.c.l.b16 %v395
        %v437 = vunpack.c.l.b16 %v396
        %v438 = vunpack.c.l.b16 %v397
        %v439 = vunpack.c.l.b16 %v398
        %v440 = vunpack.c.l.b16 %v399
        %v441 = vunpack.c.l.b16 %v400
        %v442 = vunpack.c.l.b16 %v401
        %v443 = vunpack.c.l.b16 %v402
        %v444 = vunpack.c.l.b16 %v403
        %v445 = vunpack.c.l.b16 %v404
        %v446 = vpack.c.b16 %v431, %v430
        %v447 = vpack.c.b16 %v433, %v432
        %v448 = vpack.c.b16 %v435, %v434
        %v449 = vpack.c.b16 %v437, %v436
        %v450 = vpack.c.b16 %v439, %v438
        %v451 = vpack.c.b16 %v441, %v440
        %v452 = vpack.c.b16 %v443, %v442
        %v453 = vpack.c.b16 %v445, %v444
        %462 = vmatprep.subr.bf16.mxu0 0
        %463 = vmatpush1.bf16.msra.mxu0 %v446
        %464 = vmatprep.subr.bf16.mxu0 0
        %465 = vmatpush1.bf16.msra.mxu0 %v447
        %466 = vmatprep.subr.bf16.mxu0 0
        %467 = vmatpush1.bf16.msra.mxu0 %v448
        %468 = vmatprep.subr.bf16.mxu0 0
        %469 = vmatpush1.bf16.msra.mxu0 %v449
        %470 = vmatprep.subr.bf16.mxu0 0
        %471 = vmatpush1.bf16.msra.mxu0 %v450
        %472 = vmatprep.subr.bf16.mxu0 0
        %473 = vmatpush1.bf16.msra.mxu0 %v451
        %474 = vmatprep.subr.bf16.mxu0 0
        %475 = vmatpush1.bf16.msra.mxu0 %v452
        %476 = vmatprep.subr.bf16.mxu0 0
        %477 = vmatpush1.bf16.msra.mxu0 %v453
        %478 = vmatprep.subr.bf16.mxu0 0
        %479 = vmatpush1.bf16.msra.mxu0 0
        %480 = vmatprep.subr.bf16.mxu0 0
        %481 = vmatpush1.bf16.msra.mxu0 0
        %482 = vmatprep.subr.bf16.mxu0 0
        %483 = vmatpush1.bf16.msra.mxu0 0
        %484 = vmatprep.subr.bf16.mxu0 0
        %485 = vmatpush1.bf16.msra.mxu0 0
        %486 = vmatprep.subr.bf16.mxu0 0
        %487 = vmatpush1.bf16.msra.mxu0 0
        %488 = vmatprep.subr.bf16.mxu0 0
        %489 = vmatpush1.bf16.msra.mxu0 0
        %490 = vmatprep.subr.bf16.mxu0 0
        %491 = vmatpush1.bf16.msra.mxu0 0
        %492 = vmatprep.subr.bf16.mxu0 0
        %493 = vmatpush1.bf16.msra.mxu0 0
        %494 = vmatprep.mubr.bf16.mxu0 0
        %495 = vmatmul.mubr.bf16.gmra.mrb[0].mxu0 %v388
        %v496 = vpop.f32.mrb[0].mxu0
        %v497 = vadd.f32 %v413, %v496
        %v498 = vpop.f32.mrb[0].mxu0
        %v499 = vpop.f32.mrb[0].mxu0
        %v500 = vpop.f32.mrb[0].mxu0
        %501 = vdwg.mxu0
        %v502 = vmax.f32 %v497, 0.0
        %503 = vst [vmem:[%s272] sm:$0xff] %v502
        %s504 = sand.u32 %s124, 1
        %s505 = scalar_lea.sflag [#allocation4], %s504
        %s506 = sand.u32 %s124, 1
        %s507 = smul.addr %s506, 8
        %s508 = scalar_lea.vmem [#allocation8], %s507
        %s509 = sand.u32 %s150, 1
        %s510 = scalar_lea.sflag [#allocation10], %s509
        %s511 = sand.u32 %s150, 1
        %s512 = smul.addr %s511, 8
        %s513 = scalar_lea.vmem [#allocation9], %s512
        // Predicated region
        $region49: #{tpu_custom_call.1} parent=35 // pred_check
          %p514 = pneg %p134
        $region50: #{tpu_custom_call.1} parent=35 // pred_check_branch
          %516 = sbr.rel (%p514) target = $region52
        $region51: #{tpu_custom_call.1} parent=35 // pred_region
          %s518 = ssub.s32 128, 128
          %519 = vsyncadd %s505, %s518
          %s520 = smul.addr %s27, 128
          %s521 = scalar_lea.hbm %s4, %s520
          %s523 = sshll.u32 %s508, 4
          %s524 = int_to_ptr.vmem [resolvable:$true] %s523
          %526 = dma.vmem_to_hbm [thread:$0]  %s524, 128, %s521, %s505
        $region52: #{tpu_custom_call.1} parent=35 // pred_fallthru
          _
        // Predicated region
        $region53: #{tpu_custom_call.1} parent=35 // pred_check
          %p527 = pneg %p160
        $region54: #{tpu_custom_call.1} parent=35 // pred_check_branch
          %529 = sbr.rel (%p527) target = $region56
        $region55: #{tpu_custom_call.1} parent=35 // pred_region
          %s531 = ssub.s32 128, 128
          %532 = vsyncadd %s510, %s531
          %s533 = smul.addr %s27, 128
          %s534 = scalar_lea.hbm %s5, %s533
          %s536 = sshll.u32 %s513, 4
          %s537 = int_to_ptr.vmem [resolvable:$true] %s536
          %539 = dma.vmem_to_hbm [thread:$0]  %s537, 128, %s534, %s510
        $region56: #{tpu_custom_call.1} parent=35 // pred_fallthru
          _
      $region36: #{tpu_custom_call.1} parent=5 // pred_fallthru
        _
      %p540 = scmp.le.s32.totalorder 2, %s22
      // Predicated region
      $region57: #{tpu_custom_call.1} parent=5 // pred_check
        %p541 = pneg %p540
      $region58: #{tpu_custom_call.1} parent=5 // pred_check_branch
        %543 = sbr.rel (%p541) target = $region60
      $region59: #{tpu_custom_call.1} parent=5 // pred_region
        %s544 = ssub.s32 %s22, 2
        // Predicated region
        $region61: #{tpu_custom_call.1} parent=59 // pred_check
          %p545 = pneg %p140
        $region62: #{tpu_custom_call.1} parent=59 // pred_check_branch
          %547 = sbr.rel (%p545) target = $region64
        $region63: #{tpu_custom_call.1} parent=59 // pred_region
          %s548 = sand.u32 %s125, 1
          %s549 = scalar_lea.sflag [#allocation4], %s548
          %s550 = sand.u32 %s125, 1
          %s551 = smul.addr %s550, 8
          %s552 = scalar_lea.vmem [#allocation8], %s551
          %553 = dma.done %s549, 128
        $region64: #{tpu_custom_call.1} parent=59 // pred_fallthru
          _
        // Predicated region
        $region65: #{tpu_custom_call.1} parent=59 // pred_check
          %p554 = pneg %p166
        $region66: #{tpu_custom_call.1} parent=59 // pred_check_branch
          %556 = sbr.rel (%p554) target = $region68
        $region67: #{tpu_custom_call.1} parent=59 // pred_region
          %s557 = sand.u32 %s151, 1
          %s558 = scalar_lea.sflag [#allocation10], %s557
          %s559 = sand.u32 %s151, 1
          %s560 = smul.addr %s559, 8
          %s561 = scalar_lea.vmem [#allocation9], %s560
          %562 = dma.done %s558, 128
        $region68: #{tpu_custom_call.1} parent=59 // pred_fallthru
          _
      $region60: #{tpu_custom_call.1} parent=5 // pred_fallthru
        _
    $region6: #{tpu_custom_call.1} parent=1 // loop_footer
      %s26 = sadd.s32 1, %s22
    $region7: #{tpu_custom_call.1} parent=1 // loop_footer_branch
      %21 = sbr.rel target = $region3
    $region8: #{tpu_custom_call.1} parent=1 // loop_exit
      _
    %563 = vsyncpa [#allocation3], 1
    %s564 = scalar_lea.sflag [#allocation3], 1
    %565 = vsyncpa %s564, 1
    %566 = vsyncpa [#allocation6], 1
    %567 = vsyncpa [#allocation4], 1
    %s568 = scalar_lea.sflag [#allocation4], 1
    %569 = vsyncpa %s568, 1
    %570 = vsyncpa [#allocation10], 1
    %s571 = scalar_lea.sflag [#allocation10], 1
    %572 = vsyncpa %s571, 1

</llo_original>
